<compile_context>
chip_gen: v6e
topology: v6e:2x2x1
jax: 0.10.0
libtpu: 0.0.40
codegen_flags: <defaults>
</compile_context>

<pallas_src>
import jax
import jax.numpy as jnp
from jax import lax
from jax.experimental import pallas as pl
from jax.experimental.pallas import tpu as pltpu


# Contract h's last dim with W's last dim:  (B, in) . (out, in) -> (B, out),
# i.e. torch's  x @ W.T  with no materialized transpose.
_DIMS = (((1,), (1,)), ((), ()))


def _mlp_fused_kernel(x_ref, w_ref, o_ref):
    """All L layer weights resident in VMEM, fully-unrolled in-kernel layer
    loop, f32 accumulation on the MXU. Works with or without a batch grid."""
    num_layers = w_ref.shape[0]
    h0 = x_ref[...].astype(jnp.float32)

    def body(l, h):
        w = w_ref[l]  # (out_dim, in_dim), torch nn.Linear layout
        return lax.dot_general(
            h.astype(w.dtype), w,
            dimension_numbers=_DIMS,
            preferred_element_type=jnp.float32,
        )

    h = lax.fori_loop(0, num_layers, body, h0, unroll=True)
    o_ref[...] = h.astype(o_ref.dtype)


def _mlp_stream_kernel(x_ref, w_ref, o_ref):
    """Fallback for weight stacks too large to keep resident: grid over
    layers ('arbitrary'), one layer weight streamed per step, hidden state
    carried in the resident output block (written back to HBM once)."""
    layer = pl.program_id(0)

    @pl.when(layer == 0)
    def _():
        o_ref[...] = x_ref[...]

    w = w_ref[0]          # (out_dim, in_dim)
    h = o_ref[...]        # resident carry
    o_ref[...] = lax.dot_general(
        h.astype(w.dtype), w,
        dimension_numbers=_DIMS,
        preferred_element_type=jnp.float32,
    ).astype(o_ref.dtype)
    # TODO(synk): for D so large that a single (D, D) weight block blows the
    # (v7x 64 MiB) VMEM budget, add an N-dimension weight tile here.


def mlp_forward(x, weights, *, weight_dtype=jnp.bfloat16, batch_tile=None,
                max_resident_bytes=48 * 1024 * 1024):
    """Forward pass of MlpModel (stage_mgr is None branch).

    x:       (B, D) activations.
    weights: (L, out_dim, in_dim) stacked torch nn.Linear weights (bias=None).
    """
    B, D = x.shape
    L, out_dim, in_dim = weights.shape
    assert in_dim == D and out_dim == D, \
        "chained bias-free Linears need in_dim == out_dim"

    # TODO(synk): in production, cast weights at weight-prep time, not per call.
    w = weights.astype(weight_dtype)
    w_bytes = L * out_dim * in_dim * jnp.dtype(weight_dtype).itemsize

    # Auto-enable batch tiling for very large batches (megacore sharding).
    if batch_tile is None and B >= 1024:
        batch_tile = 512

    if batch_tile is not None and batch_tile < B:
        tb = max(8, (batch_tile // 8) * 8)   # sublane-aligned batch tile
        grid_b = pl.cdiv(B, tb)
    else:
        tb, grid_b = B, 1

    # in + out activation blocks (double-buffered when gridded), f32 upper bound.
    act_bytes = 4 * tb * D * 4
    # Conservatively assume the weight block may be double-buffered when a
    # batch grid is present.
    resident_bytes = (2 if grid_b > 1 else 1) * w_bytes + act_bytes

    if resident_bytes <= max_resident_bytes:
        vmem_limit = None
        if resident_bytes + (1 << 20) > (16 << 20):
            vmem_limit = min(resident_bytes + (16 << 20), 100 << 20)

        if grid_b == 1:
            # Fast path: one pallas_call, no grid, everything resident in VMEM.
            cp = (pltpu.CompilerParams(vmem_limit_bytes=vmem_limit)
                  if vmem_limit is not None else None)
            return pl.pallas_call(
                _mlp_fused_kernel,
                out_shape=jax.ShapeDtypeStruct((B, D), x.dtype),
                compiler_params=cp,
            )(x, w)

        # Batch-tiled fused path: weight block constant (resident), batch axis
        # "parallel" so big batches shard across TensorCores.
        cp_kwargs = dict(dimension_semantics=("parallel",))
        if vmem_limit is not None:
            cp_kwargs["vmem_limit_bytes"] = vmem_limit
        return pl.pallas_call(
            _mlp_fused_kernel,
            out_shape=jax.ShapeDtypeStruct((B, D), x.dtype),
            grid_spec=pltpu.PrefetchScalarGridSpec(
                num_scalar_prefetch=0,
                grid=(grid_b,),
                in_specs=[
                    pl.BlockSpec((tb, D), lambda i: (i, 0)),                  # act tile
                    pl.BlockSpec((L, out_dim, in_dim), lambda i: (0, 0, 0)),  # resident W
                ],
                out_specs=pl.BlockSpec((tb, D), lambda i: (i, 0)),
            ),
            compiler_params=pltpu.CompilerParams(**cp_kwargs),
        )(x, w)

    # Large-model path: stream one layer's weight per grid step.
    per_layer_w_bytes = out_dim * in_dim * jnp.dtype(weight_dtype).itemsize
    cp_kwargs = dict(dimension_semantics=("arbitrary",))
    vmem_needed = 2 * per_layer_w_bytes + 3 * B * D * 4 + (1 << 20)
    if vmem_needed > (16 << 20):
        cp_kwargs["vmem_limit_bytes"] = min(vmem_needed + (8 << 20), 100 << 20)

    return pl.pallas_call(
        _mlp_stream_kernel,
        out_shape=jax.ShapeDtypeStruct((B, D), x.dtype),
        grid_spec=pltpu.PrefetchScalarGridSpec(
            num_scalar_prefetch=0,
            grid=(L,),
            in_specs=[
                pl.BlockSpec((B, D), lambda l: (0, 0)),                   # activations
                pl.BlockSpec((1, out_dim, in_dim), lambda l: (l, 0, 0)),  # layer weight
            ],
            out_specs=pl.BlockSpec((B, D), lambda l: (0, 0)),             # resident carry
        ),
        compiler_params=pltpu.CompilerParams(**cp_kwargs),
    )(x, w)


def mlp_reference(x, weights):
    h = x
    for l in range(weights.shape[0]):
        h = h @ weights[l].T  # nn.Linear(bias=None): y = x @ W.T
    return h


if __name__ == "__main__":
    # Small shapes consistent with the module: in_dim == out_dim (chained linears)
    batch, dim, num_layers = 8, 32, 4

    key = jax.random.PRNGKey(0)
    kx, kw, kx2 = jax.random.split(key, 3)
    x = jax.random.normal(kx, (batch, dim), dtype=jnp.float32)
    # Deterministic weights, torch-style (out_dim, in_dim) per layer
    weights = (
        jax.random.normal(kw, (num_layers, dim, dim), dtype=jnp.float32)
        * (1.0 / jnp.sqrt(dim))
    )

    ref = mlp_reference(x, weights)

    # 1) Fused resident-weight path (no grid), f32 weights (tight check).
    out_f32 = jax.block_until_ready(
        mlp_forward(x, weights, weight_dtype=jnp.float32))
    assert out_f32.shape == (batch, dim)
    assert jnp.allclose(out_f32, ref, rtol=1e-4, atol=1e-4)

    # 2) Default path: bf16 weights, f32 accumulation (looser tolerance).
    out_bf16 = jax.block_until_ready(mlp_forward(x, weights))
    assert out_bf16.shape == (batch, dim)
    assert jnp.allclose(out_bf16, ref, rtol=5e-2, atol=5e-2)

    # 3) Batch-tiled fused path (forced small tile) — megacore-parallel variant.
    x2 = jax.random.normal(kx2, (2 * batch, dim), dtype=jnp.float32)
    ref2 = mlp_reference(x2, weights)
    out_tiled = jax.block_until_ready(
        mlp_forward(x2, weights, weight_dtype=jnp.float32, batch_tile=8))
    assert out_tiled.shape == (2 * batch, dim)
    assert jnp.allclose(out_tiled, ref2, rtol=1e-4, atol=1e-4)

    # 4) Layer-streaming fallback (forced) — keeps large-model path exercised.
    out_stream = jax.block_until_ready(
        mlp_forward(x, weights, weight_dtype=jnp.float32, max_resident_bytes=0))
    assert jnp.allclose(out_stream, ref, rtol=1e-4, atol=1e-4)

    print("KERNEL_OK")
</pallas_src>

<mosaic_0001>
module attributes {stable_mosaic.version = 11 : i64} {
  func.func @_mlp_fused_kernel(%arg0: memref<8x32xf32, #tpu.memory_space<vmem>>, %arg1: memref<4x32x32xf32, #tpu.memory_space<vmem>>, %arg2: memref<8x32xf32, #tpu.memory_space<vmem>>) attributes {dimension_semantics = [], scalar_prefetch = 0 : i64, scratch_operands = 0 : i64, tpu.core_type = #tpu.core_type<tc>} {
    %c0 = arith.constant 0 : index
    %c0_0 = arith.constant 0 : index
    %0 = vector.load %arg0[%c0, %c0_0] : memref<8x32xf32, #tpu.memory_space<vmem>>, vector<8x32xf32>
    %c0_i32 = arith.constant 0 : i32
    %1 = arith.index_cast %c0_i32 : i32 to index
    %c0_1 = arith.constant 0 : index
    %c0_2 = arith.constant 0 : index
    %2 = vector.load %arg1[%1, %c0_1, %c0_2] : memref<4x32x32xf32, #tpu.memory_space<vmem>>, vector<1x32x32xf32>
    %3 = vector.shape_cast %2 : vector<1x32x32xf32> to vector<32x32xf32>
    %cst = arith.constant dense<0.000000e+00> : vector<8x32xf32>
    %4 = tpu.matmul %0, %3, %cst {dimension_numbers = #tpu.dot_dimension_numbers<[1], [1], [0], [0], [0, 0, 1, 0], [], []>} : vector<8x32xf32>, vector<32x32xf32>, vector<8x32xf32> -> vector<8x32xf32>
    %c1_i32 = arith.constant 1 : i32
    %5 = arith.index_cast %c1_i32 : i32 to index
    %c0_3 = arith.constant 0 : index
    %c0_4 = arith.constant 0 : index
    %6 = vector.load %arg1[%5, %c0_3, %c0_4] : memref<4x32x32xf32, #tpu.memory_space<vmem>>, vector<1x32x32xf32>
    %7 = vector.shape_cast %6 : vector<1x32x32xf32> to vector<32x32xf32>
    %cst_5 = arith.constant dense<0.000000e+00> : vector<8x32xf32>
    %8 = tpu.matmul %4, %7, %cst_5 {dimension_numbers = #tpu.dot_dimension_numbers<[1], [1], [0], [0], [0, 0, 1, 0], [], []>} : vector<8x32xf32>, vector<32x32xf32>, vector<8x32xf32> -> vector<8x32xf32>
    %c2_i32 = arith.constant 2 : i32
    %9 = arith.index_cast %c2_i32 : i32 to index
    %c0_6 = arith.constant 0 : index
    %c0_7 = arith.constant 0 : index
    %10 = vector.load %arg1[%9, %c0_6, %c0_7] : memref<4x32x32xf32, #tpu.memory_space<vmem>>, vector<1x32x32xf32>
    %11 = vector.shape_cast %10 : vector<1x32x32xf32> to vector<32x32xf32>
    %cst_8 = arith.constant dense<0.000000e+00> : vector<8x32xf32>
    %12 = tpu.matmul %8, %11, %cst_8 {dimension_numbers = #tpu.dot_dimension_numbers<[1], [1], [0], [0], [0, 0, 1, 0], [], []>} : vector<8x32xf32>, vector<32x32xf32>, vector<8x32xf32> -> vector<8x32xf32>
    %c3_i32 = arith.constant 3 : i32
    %13 = arith.index_cast %c3_i32 : i32 to index
    %c0_9 = arith.constant 0 : index
    %c0_10 = arith.constant 0 : index
    %14 = vector.load %arg1[%13, %c0_9, %c0_10] : memref<4x32x32xf32, #tpu.memory_space<vmem>>, vector<1x32x32xf32>
    %15 = vector.shape_cast %14 : vector<1x32x32xf32> to vector<32x32xf32>
    %cst_11 = arith.constant dense<0.000000e+00> : vector<8x32xf32>
    %16 = tpu.matmul %12, %15, %cst_11 {dimension_numbers = #tpu.dot_dimension_numbers<[1], [1], [0], [0], [0, 0, 1, 0], [], []>} : vector<8x32xf32>, vector<32x32xf32>, vector<8x32xf32> -> vector<8x32xf32>
    %c4_i32 = arith.constant 4 : i32
    %c0_12 = arith.constant 0 : index
    %c0_13 = arith.constant 0 : index
    %17 = vector.load %arg2[%c0_12, %c0_13] : memref<8x32xf32, #tpu.memory_space<vmem>>, vector<8x32xf32>
    tpu.vector_store %arg2[%c0_12, %c0_13], %16 {strides = array<i32>} : memref<8x32xf32, #tpu.memory_space<vmem>>, vector<8x32xf32>,
    return
  }
}

</mosaic_0001>

<llo_original>
// kernel: tpu_custom_call.1
$region0: #{tpu_custom_call.1}
  #allocation0 [shape = 'u32[]', space=smem, size = 0x4, offset = 0x4, fixed_abs, tag = 'smem constant byte address 0x4 - core index']
  #allocation1 [shape = 'u32[144,128]{1,0:T(1,128)}', space=vmem, size = 0x12000, scoped, tag = 'internal scratch']
  %s0 = inlined_call_operand.hbm [shape: f32[8,32], index: 0, kind: input, shape index: {}]
  %s1 = inlined_call_operand.hbm [shape: f32[4,32,32], index: 1, kind: input, shape index: {}]
  %s2 = inlined_call_operand.hbm [shape: f32[8,32], index: 2, kind: output, shape index: {}]
  %s3 = sld [smem:[#allocation0]]
  $region26: #{tpu_custom_call.1} parent=0
    _
  %s5 = ssub.s32 1, %s3
  %s6 = scalar_select 0, %s5, %s3
  $region1: #{tpu_custom_call.1} parent=0
    #allocation2 [shape = 'u8[4096]{0}', space=vmem, size = 0x1000, scoped, tag = 'input window, operand 0, single buffered']
    #allocation3 [shape = 's32[1]{0}', space=sflag, size = 0x4, scoped, tag = 'scoped memory for tpu_custom_call.1']
    #allocation4 [shape = 's32[1]{0}', space=sflag, size = 0x4, scoped, tag = 'scoped memory for tpu_custom_call.1']
    #allocation5 [shape = 'u8[65536]{0}', space=vmem, size = 0x10000, scoped, tag = 'input window, operand 1, single buffered']
    #allocation6 [shape = 's32[1]{0}', space=sflag, size = 0x4, scoped, tag = 'scoped memory for tpu_custom_call.1']
    #allocation7 [shape = 'u8[4096]{0}', space=vmem, size = 0x1000, scoped, tag = 'output window, operand 0, single buffered']
    %7 = vsyncpa [#allocation3], 0
    %8 = vsyncpa [#allocation6], 0
    %9 = vsyncpa [#allocation4], 0
    // Predicated region
    $region2: #{tpu_custom_call.1} parent=1 // pred_check
      _
    $region3: #{tpu_custom_call.1} parent=1 // pred_check_branch
      %11 = sbr.rel (0) target = $region5
    $region4: #{tpu_custom_call.1} parent=1 // pred_region
      %s13 = ssub.s32 128, 128
      %14 = vsyncadd [#allocation3], %s13
      %s16 = sshll.u32 [#allocation2], 4
      %s17 = int_to_ptr.vmem [resolvable:$true] %s16
      %19 = dma.hbm_to_vmem [thread:$0]  %s0, 128, %s17, [#allocation3]
    $region5: #{tpu_custom_call.1} parent=1 // pred_fallthru
      _
    // Predicated region
    $region6: #{tpu_custom_call.1} parent=1 // pred_check
      _
    $region7: #{tpu_custom_call.1} parent=1 // pred_check_branch
      %21 = sbr.rel (0) target = $region9
    $region8: #{tpu_custom_call.1} parent=1 // pred_region
      %s23 = ssub.s32 2048, 2048
      %24 = vsyncadd [#allocation6], %s23
      %s25 = sshll.u32 [#allocation5], 4
      %s26 = int_to_ptr.vmem [resolvable:$true] %s25
      %31 = dma.hbm_to_vmem [thread:$0]  %s1, 2048, %s26, [#allocation6], 128, 128, 8
    $region9: #{tpu_custom_call.1} parent=1 // pred_fallthru
      _
    // Predicated region
    $region10: #{tpu_custom_call.1} parent=1 // pred_check
      _
    $region11: #{tpu_custom_call.1} parent=1 // pred_check_branch
      %33 = sbr.rel (0) target = $region13
    $region12: #{tpu_custom_call.1} parent=1 // pred_region
      %34 = dma.done [#allocation3], 128
    $region13: #{tpu_custom_call.1} parent=1 // pred_fallthru
      _
    // Predicated region
    $region14: #{tpu_custom_call.1} parent=1 // pred_check
      _
    $region15: #{tpu_custom_call.1} parent=1 // pred_check_branch
      %36 = sbr.rel (0) target = $region17
    $region16: #{tpu_custom_call.1} parent=1 // pred_region
      %37 = dma.done [#allocation6], 2048
    $region17: #{tpu_custom_call.1} parent=1 // pred_fallthru
      _
    %v38 = vld [vmem:[#allocation2] sm:$0xff]
    %v39 = vld [vmem:[#allocation5] sm:$0xff]
    %v40 = vld [vmem:[#allocation5 + $0x8] sm:$0xff]
    %v41 = vld [vmem:[#allocation5 + $0x10] sm:$0xff]
    %v42 = vld [vmem:[#allocation5 + $0x18] sm:$0xff]
    %vm43 = vcmask 261120
    %v45 = vsel %vm43, %v38, 0
    %v48 = vsel %vm43, %v39, 0
    %v51 = vsel %vm43, %v40, 0
    %v54 = vsel %vm43, %v41, 0
    %v57 = vsel %vm43, %v42, 0
    %59 = vmatprep.subr.mxu0 0.0
    %60 = vmatpush1.xpose.msra.mxu0 0.0
    %61 = vmatprep.subr.mxu0 0.0
    %62 = vmatpush1.xpose.msra.mxu0 0.0
    %63 = vmatprep.subr.mxu0 0.0
    %64 = vmatpush1.xpose.msra.mxu0 0.0
    %65 = vmatprep.subr.mxu0 0.0
    %66 = vmatpush1.xpose.msra.mxu0 0.0
    %67 = vmatprep.subr.mxu0 0.0
    %68 = vmatpush1.xpose.msra.mxu0 0.0
    %69 = vmatprep.subr.mxu0 0.0
    %70 = vmatpush1.xpose.msra.mxu0 0.0
    %71 = vmatprep.subr.mxu0 0.0
    %72 = vmatpush1.xpose.msra.mxu0 0.0
    %73 = vmatprep.subr.mxu0 0.0
    %74 = vmatpush1.xpose.msra.mxu0 0.0
    %75 = vmatprep.subr.mxu0 0.0
    %76 = vmatpush1.xpose.msra.mxu0 0.0
    %77 = vmatprep.subr.mxu0 0.0
    %78 = vmatpush1.xpose.msra.mxu0 0.0
    %79 = vmatprep.subr.mxu0 0.0
    %80 = vmatpush1.xpose.msra.mxu0 0.0
    %81 = vmatprep.subr.mxu0 0.0
    %82 = vmatpush1.xpose.msra.mxu0 0.0
    %83 = vmatprep.subr.mxu0 0.0
    %84 = vmatpush1.xpose.msra.mxu0 %v57
    %85 = vmatprep.subr.mxu0 0.0
    %86 = vmatpush1.xpose.msra.mxu0 %v54
    %87 = vmatprep.subr.mxu0 0.0
    %88 = vmatpush1.xpose.msra.mxu0 %v51
    %89 = vmatprep.subr.mxu0 0.0
    %90 = vmatpush1.xpose.msra.mxu0 %v48
    %91 = vmatprep.subr.mxu0 0.0
    %92 = vmatpush2.xpose.msra.mxu0 0.0
    %93 = vmatprep.subr.mxu0 0.0
    %94 = vmatpush2.xpose.msra.mxu0 0.0
    %95 = vmatprep.subr.mxu0 0.0
    %96 = vmatpush2.xpose.msra.mxu0 0.0
    %97 = vmatprep.subr.mxu0 0.0
    %98 = vmatpush2.xpose.msra.mxu0 0.0
    %99 = vmatprep.subr.mxu0 0.0
    %100 = vmatpush2.xpose.msra.mxu0 0.0
    %101 = vmatprep.subr.mxu0 0.0
    %102 = vmatpush2.xpose.msra.mxu0 0.0
    %103 = vmatprep.subr.mxu0 0.0
    %104 = vmatpush2.xpose.msra.mxu0 0.0
    %105 = vmatprep.subr.mxu0 0.0
    %106 = vmatpush2.xpose.msra.mxu0 0.0
    %107 = vmatprep.subr.mxu0 0.0
    %108 = vmatpush2.xpose.msra.mxu0 0.0
    %109 = vmatprep.subr.mxu0 0.0
    %110 = vmatpush2.xpose.msra.mxu0 0.0
    %111 = vmatprep.subr.mxu0 0.0
    %112 = vmatpush2.xpose.msra.mxu0 0.0
    %113 = vmatprep.subr.mxu0 0.0
    %114 = vmatpush2.xpose.msra.mxu0 0.0
    %115 = vmatprep.subr.mxu0 0.0
    %116 = vmatpush2.xpose.msra.mxu0 0.0
    %117 = vmatprep.subr.mxu0 0.0
    %118 = vmatpush2.xpose.msra.mxu0 0.0
    %119 = vmatprep.subr.mxu0 0.0
    %120 = vmatpush2.xpose.msra.mxu0 0.0
    %121 = vmatprep.subr.mxu0 0.0
    %122 = vmatpush2.xpose.msra.mxu0 0.0
    %123 = vmatprep.mubr.f32.mxu0 0.0
    %124 = vmatmul.mubr.f32.gmra.mxu0 %v45
    %v125 = vpop.f32.mrf.mxu0
    %v126 = vadd.f32 0.0, %v125
    %v127 = vpop.f32.mrf.mxu0
    %128 = vdwg.mxu0
    %s129 = scalar_lea.vmem [#allocation5], 32
    %v130 = vld [vmem:[%s129] sm:$0xff]
    %v131 = vld [vmem:[%s129 + $0x8] sm:$0xff]
    %v132 = vld [vmem:[%s129 + $0x10] sm:$0xff]
    %v133 = vld [vmem:[%s129 + $0x18] sm:$0xff]
    %v135 = vsel %vm43, %v126, 0
    %v138 = vsel %vm43, %v130, 0
    %v141 = vsel %vm43, %v131, 0
    %v144 = vsel %vm43, %v132, 0
    %v147 = vsel %vm43, %v133, 0
    %149 = vmatprep.subr.mxu0 0.0
    %150 = vmatpush1.xpose.msra.mxu0 0.0
    %151 = vmatprep.subr.mxu0 0.0
    %152 = vmatpush1.xpose.msra.mxu0 0.0
    %153 = vmatprep.subr.mxu0 0.0
    %154 = vmatpush1.xpose.msra.mxu0 0.0
    %155 = vmatprep.subr.mxu0 0.0
    %156 = vmatpush1.xpose.msra.mxu0 0.0
    %157 = vmatprep.subr.mxu0 0.0
    %158 = vmatpush1.xpose.msra.mxu0 0.0
    %159 = vmatprep.subr.mxu0 0.0
    %160 = vmatpush1.xpose.msra.mxu0 0.0
    %161 = vmatprep.subr.mxu0 0.0
    %162 = vmatpush1.xpose.msra.mxu0 0.0
    %163 = vmatprep.subr.mxu0 0.0
    %164 = vmatpush1.xpose.msra.mxu0 0.0
    %165 = vmatprep.subr.mxu0 0.0
    %166 = vmatpush1.xpose.msra.mxu0 0.0
    %167 = vmatprep.subr.mxu0 0.0
    %168 = vmatpush1.xpose.msra.mxu0 0.0
    %169 = vmatprep.subr.mxu0 0.0
    %170 = vmatpush1.xpose.msra.mxu0 0.0
    %171 = vmatprep.subr.mxu0 0.0
    %172 = vmatpush1.xpose.msra.mxu0 0.0
    %173 = vmatprep.subr.mxu0 0.0
    %174 = vmatpush1.xpose.msra.mxu0 %v147
    %175 = vmatprep.subr.mxu0 0.0
    %176 = vmatpush1.xpose.msra.mxu0 %v144
    %177 = vmatprep.subr.mxu0 0.0
    %178 = vmatpush1.xpose.msra.mxu0 %v141
    %179 = vmatprep.subr.mxu0 0.0
    %180 = vmatpush1.xpose.msra.mxu0 %v138
    %181 = vmatprep.subr.mxu0 0.0
    %182 = vmatpush2.xpose.msra.mxu0 0.0
    %183 = vmatprep.subr.mxu0 0.0
    %184 = vmatpush2.xpose.msra.mxu0 0.0
    %185 = vmatprep.subr.mxu0 0.0
    %186 = vmatpush2.xpose.msra.mxu0 0.0
    %187 = vmatprep.subr.mxu0 0.0
    %188 = vmatpush2.xpose.msra.mxu0 0.0
    %189 = vmatprep.subr.mxu0 0.0
    %190 = vmatpush2.xpose.msra.mxu0 0.0
    %191 = vmatprep.subr.mxu0 0.0
    %192 = vmatpush2.xpose.msra.mxu0 0.0
    %193 = vmatprep.subr.mxu0 0.0
    %194 = vmatpush2.xpose.msra.mxu0 0.0
    %195 = vmatprep.subr.mxu0 0.0
    %196 = vmatpush2.xpose.msra.mxu0 0.0
    %197 = vmatprep.subr.mxu0 0.0
    %198 = vmatpush2.xpose.msra.mxu0 0.0
    %199 = vmatprep.subr.mxu0 0.0
    %200 = vmatpush2.xpose.msra.mxu0 0.0
    %201 = vmatprep.subr.mxu0 0.0
    %202 = vmatpush2.xpose.msra.mxu0 0.0
    %203 = vmatprep.subr.mxu0 0.0
    %204 = vmatpush2.xpose.msra.mxu0 0.0
    %205 = vmatprep.subr.mxu0 0.0
    %206 = vmatpush2.xpose.msra.mxu0 0.0
    %207 = vmatprep.subr.mxu0 0.0
    %208 = vmatpush2.xpose.msra.mxu0 0.0
    %209 = vmatprep.subr.mxu0 0.0
    %210 = vmatpush2.xpose.msra.mxu0 0.0
    %211 = vmatprep.subr.mxu0 0.0
    %212 = vmatpush2.xpose.msra.mxu0 0.0
    %213 = vmatprep.mubr.f32.mxu0 0.0
    %214 = vmatmul.mubr.f32.gmra.mxu0 %v135
    %v215 = vpop.f32.mrf.mxu0
    %v216 = vadd.f32 0.0, %v215
    %v217 = vpop.f32.mrf.mxu0
    %218 = vdwg.mxu0
    %s219 = scalar_lea.vmem [#allocation5], 64
    %v220 = vld [vmem:[%s219] sm:$0xff]
    %v221 = vld [vmem:[%s219 + $0x8] sm:$0xff]
    %v222 = vld [vmem:[%s219 + $0x10] sm:$0xff]
    %v223 = vld [vmem:[%s219 + $0x18] sm:$0xff]
    %v225 = vsel %vm43, %v216, 0
    %v228 = vsel %vm43, %v220, 0
    %v231 = vsel %vm43, %v221, 0
    %v234 = vsel %vm43, %v222, 0
    %v237 = vsel %vm43, %v223, 0
    %239 = vmatprep.subr.mxu0 0.0
    %240 = vmatpush1.xpose.msra.mxu0 0.0
    %241 = vmatprep.subr.mxu0 0.0
    %242 = vmatpush1.xpose.msra.mxu0 0.0
    %243 = vmatprep.subr.mxu0 0.0
    %244 = vmatpush1.xpose.msra.mxu0 0.0
    %245 = vmatprep.subr.mxu0 0.0
    %246 = vmatpush1.xpose.msra.mxu0 0.0
    %247 = vmatprep.subr.mxu0 0.0
    %248 = vmatpush1.xpose.msra.mxu0 0.0
    %249 = vmatprep.subr.mxu0 0.0
    %250 = vmatpush1.xpose.msra.mxu0 0.0
    %251 = vmatprep.subr.mxu0 0.0
    %252 = vmatpush1.xpose.msra.mxu0 0.0
    %253 = vmatprep.subr.mxu0 0.0
    %254 = vmatpush1.xpose.msra.mxu0 0.0
    %255 = vmatprep.subr.mxu0 0.0
    %256 = vmatpush1.xpose.msra.mxu0 0.0
    %257 = vmatprep.subr.mxu0 0.0
    %258 = vmatpush1.xpose.msra.mxu0 0.0
    %259 = vmatprep.subr.mxu0 0.0
    %260 = vmatpush1.xpose.msra.mxu0 0.0
    %261 = vmatprep.subr.mxu0 0.0
    %262 = vmatpush1.xpose.msra.mxu0 0.0
    %263 = vmatprep.subr.mxu0 0.0
    %264 = vmatpush1.xpose.msra.mxu0 %v237
    %265 = vmatprep.subr.mxu0 0.0
    %266 = vmatpush1.xpose.msra.mxu0 %v234
    %267 = vmatprep.subr.mxu0 0.0
    %268 = vmatpush1.xpose.msra.mxu0 %v231
    %269 = vmatprep.subr.mxu0 0.0
    %270 = vmatpush1.xpose.msra.mxu0 %v228
    %271 = vmatprep.subr.mxu0 0.0
    %272 = vmatpush2.xpose.msra.mxu0 0.0
    %273 = vmatprep.subr.mxu0 0.0
    %274 = vmatpush2.xpose.msra.mxu0 0.0
    %275 = vmatprep.subr.mxu0 0.0
    %276 = vmatpush2.xpose.msra.mxu0 0.0
    %277 = vmatprep.subr.mxu0 0.0
    %278 = vmatpush2.xpose.msra.mxu0 0.0
    %279 = vmatprep.subr.mxu0 0.0
    %280 = vmatpush2.xpose.msra.mxu0 0.0
    %281 = vmatprep.subr.mxu0 0.0
    %282 = vmatpush2.xpose.msra.mxu0 0.0
    %283 = vmatprep.subr.mxu0 0.0
    %284 = vmatpush2.xpose.msra.mxu0 0.0
    %285 = vmatprep.subr.mxu0 0.0
    %286 = vmatpush2.xpose.msra.mxu0 0.0
    %287 = vmatprep.subr.mxu0 0.0
    %288 = vmatpush2.xpose.msra.mxu0 0.0
    %289 = vmatprep.subr.mxu0 0.0
    %290 = vmatpush2.xpose.msra.mxu0 0.0
    %291 = vmatprep.subr.mxu0 0.0
    %292 = vmatpush2.xpose.msra.mxu0 0.0
    %293 = vmatprep.subr.mxu0 0.0
    %294 = vmatpush2.xpose.msra.mxu0 0.0
    %295 = vmatprep.subr.mxu0 0.0
    %296 = vmatpush2.xpose.msra.mxu0 0.0
    %297 = vmatprep.subr.mxu0 0.0
    %298 = vmatpush2.xpose.msra.mxu0 0.0
    %299 = vmatprep.subr.mxu0 0.0
    %300 = vmatpush2.xpose.msra.mxu0 0.0
    %301 = vmatprep.subr.mxu0 0.0
    %302 = vmatpush2.xpose.msra.mxu0 0.0
    %303 = vmatprep.mubr.f32.mxu0 0.0
    %304 = vmatmul.mubr.f32.gmra.mxu0 %v225
    %v305 = vpop.f32.mrf.mxu0
    %v306 = vadd.f32 0.0, %v305
    %v307 = vpop.f32.mrf.mxu0
    %308 = vdwg.mxu0
    %s309 = scalar_lea.vmem [#allocation5], 96
    %v310 = vld [vmem:[%s309] sm:$0xff]
    %v311 = vld [vmem:[%s309 + $0x8] sm:$0xff]
    %v312 = vld [vmem:[%s309 + $0x10] sm:$0xff]
    %v313 = vld [vmem:[%s309 + $0x18] sm:$0xff]
    %v315 = vsel %vm43, %v306, 0
    %v318 = vsel %vm43, %v310, 0
    %v321 = vsel %vm43, %v311, 0
    %v324 = vsel %vm43, %v312, 0
    %v327 = vsel %vm43, %v313, 0
    %329 = vmatprep.subr.mxu0 0.0
    %330 = vmatpush1.xpose.msra.mxu0 0.0
    %331 = vmatprep.subr.mxu0 0.0
    %332 = vmatpush1.xpose.msra.mxu0 0.0
    %333 = vmatprep.subr.mxu0 0.0
    %334 = vmatpush1.xpose.msra.mxu0 0.0
    %335 = vmatprep.subr.mxu0 0.0
    %336 = vmatpush1.xpose.msra.mxu0 0.0
    %337 = vmatprep.subr.mxu0 0.0
    %338 = vmatpush1.xpose.msra.mxu0 0.0
    %339 = vmatprep.subr.mxu0 0.0
    %340 = vmatpush1.xpose.msra.mxu0 0.0
    %341 = vmatprep.subr.mxu0 0.0
    %342 = vmatpush1.xpose.msra.mxu0 0.0
    %343 = vmatprep.subr.mxu0 0.0
    %344 = vmatpush1.xpose.msra.mxu0 0.0
    %345 = vmatprep.subr.mxu0 0.0
    %346 = vmatpush1.xpose.msra.mxu0 0.0
    %347 = vmatprep.subr.mxu0 0.0
    %348 = vmatpush1.xpose.msra.mxu0 0.0
    %349 = vmatprep.subr.mxu0 0.0
    %350 = vmatpush1.xpose.msra.mxu0 0.0
    %351 = vmatprep.subr.mxu0 0.0
    %352 = vmatpush1.xpose.msra.mxu0 0.0
    %353 = vmatprep.subr.mxu0 0.0
    %354 = vmatpush1.xpose.msra.mxu0 %v327
    %355 = vmatprep.subr.mxu0 0.0
    %356 = vmatpush1.xpose.msra.mxu0 %v324
    %357 = vmatprep.subr.mxu0 0.0
    %358 = vmatpush1.xpose.msra.mxu0 %v321
    %359 = vmatprep.subr.mxu0 0.0
    %360 = vmatpush1.xpose.msra.mxu0 %v318
    %361 = vmatprep.subr.mxu0 0.0
    %362 = vmatpush2.xpose.msra.mxu0 0.0
    %363 = vmatprep.subr.mxu0 0.0
    %364 = vmatpush2.xpose.msra.mxu0 0.0
    %365 = vmatprep.subr.mxu0 0.0
    %366 = vmatpush2.xpose.msra.mxu0 0.0
    %367 = vmatprep.subr.mxu0 0.0
    %368 = vmatpush2.xpose.msra.mxu0 0.0
    %369 = vmatprep.subr.mxu0 0.0
    %370 = vmatpush2.xpose.msra.mxu0 0.0
    %371 = vmatprep.subr.mxu0 0.0
    %372 = vmatpush2.xpose.msra.mxu0 0.0
    %373 = vmatprep.subr.mxu0 0.0
    %374 = vmatpush2.xpose.msra.mxu0 0.0
    %375 = vmatprep.subr.mxu0 0.0
    %376 = vmatpush2.xpose.msra.mxu0 0.0
    %377 = vmatprep.subr.mxu0 0.0
    %378 = vmatpush2.xpose.msra.mxu0 0.0
    %379 = vmatprep.subr.mxu0 0.0
    %380 = vmatpush2.xpose.msra.mxu0 0.0
    %381 = vmatprep.subr.mxu0 0.0
    %382 = vmatpush2.xpose.msra.mxu0 0.0
    %383 = vmatprep.subr.mxu0 0.0
    %384 = vmatpush2.xpose.msra.mxu0 0.0
    %385 = vmatprep.subr.mxu0 0.0
    %386 = vmatpush2.xpose.msra.mxu0 0.0
    %387 = vmatprep.subr.mxu0 0.0
    %388 = vmatpush2.xpose.msra.mxu0 0.0
    %389 = vmatprep.subr.mxu0 0.0
    %390 = vmatpush2.xpose.msra.mxu0 0.0
    %391 = vmatprep.subr.mxu0 0.0
    %392 = vmatpush2.xpose.msra.mxu0 0.0
    %393 = vmatprep.mubr.f32.mxu0 0.0
    %394 = vmatmul.mubr.f32.gmra.mxu0 %v315
    %v395 = vpop.f32.mrf.mxu0
    %v396 = vadd.f32 0.0, %v395
    %v397 = vpop.f32.mrf.mxu0
    %398 = vdwg.mxu0
    %399 = vst.msk [vmem:[#allocation7] sm:$0xff] %vm43, %v396
    // Predicated region
    $region18: #{tpu_custom_call.1} parent=1 // pred_check
      _
    $region19: #{tpu_custom_call.1} parent=1 // pred_check_branch
      %401 = sbr.rel (0) target = $region21
    $region20: #{tpu_custom_call.1} parent=1 // pred_region
      %s403 = ssub.s32 128, 128
      %404 = vsyncadd [#allocation4], %s403
      %s406 = sshll.u32 [#allocation7], 4
      %s407 = int_to_ptr.vmem [resolvable:$true] %s406
      %409 = dma.vmem_to_hbm [thread:$0]  %s407, 128, %s2, [#allocation4]
    $region21: #{tpu_custom_call.1} parent=1 // pred_fallthru
      _
    // Predicated region
    $region22: #{tpu_custom_call.1} parent=1 // pred_check
      _
    $region23: #{tpu_custom_call.1} parent=1 // pred_check_branch
      %411 = sbr.rel (0) target = $region25
    $region24: #{tpu_custom_call.1} parent=1 // pred_region
      %412 = dma.done [#allocation4], 128
    $region25: #{tpu_custom_call.1} parent=1 // pred_fallthru
      _
    %413 = vsyncpa [#allocation3], 1
    %414 = vsyncpa [#allocation6], 1
    %415 = vsyncpa [#allocation4], 1

</llo_original>
